<compile_context>
chip_gen: v7x
topology: tpu7x:2x2x1
jax: 0.10.0
libtpu: 0.0.40
codegen_flags: <defaults>
</compile_context>

<pallas_src>
import functools

import numpy as np
import jax
import jax.numpy as jnp
from jax.experimental import pallas as pl
from jax.experimental.pallas import tpu as pltpu


def _round_up(x, m):
    return (x + m - 1) // m * m


def _policy_mlp_kernel(obs_ref, goal_ref, w1s_ref, w1g_ref, b1_ref,
                       w2_ref, b2_ref, w3_ref, b3_ref, o_ref, *,
                       compute_dtype):
    # Explicit operand-dtype policy: matmul operands in `compute_dtype`
    # (bf16 by default -> single-pass MXU), accumulation + biases in f32.
    obs = obs_ref[...].astype(compute_dtype)
    goal = goal_ref[...].astype(compute_dtype)

    # Layer 1 + ReLU.  concat(obs, goal) @ W1 is computed as two dots against
    # the row-split W1, so the activation concat is never materialized.
    h = (jnp.dot(obs, w1s_ref[...], preferred_element_type=jnp.float32)
         + jnp.dot(goal, w1g_ref[...], preferred_element_type=jnp.float32)
         + b1_ref[...])
    h = jnp.maximum(h, 0.0)

    # Layer 2 + ReLU.
    h = jnp.dot(h.astype(compute_dtype), w2_ref[...],
                preferred_element_type=jnp.float32) + b2_ref[...]
    h = jnp.maximum(h, 0.0)

    # Output layer (lane-padded to a multiple of 128 -> unmasked stores).
    out = jnp.dot(h.astype(compute_dtype), w3_ref[...],
                  preferred_element_type=jnp.float32) + b3_ref[...]
    o_ref[...] = out.astype(o_ref.dtype)


def goal_policy_forward(obs, goal, params, *, horizon=None, tb=None,
                        compute_dtype=jnp.bfloat16):
    """Pallas forward pass of IndependentDiscretizedStochasticGoalPolicy.

    obs / goal : (B, ...) arrays (flattened like torch Flatten)
    params     : (w1, b1, w2, b2, w3, b3) for FCNetwork([h1, h2] -> dim_out)
    Returns f32 logits of shape (B, dim_out).
    """
    # TODO(synk): CBCNetwork (max_horizon is not None) path not implemented.
    assert horizon is None
    w1, b1, w2, b2, w3, b3 = params

    b = obs.shape[0]
    obs_f = obs.reshape(b, -1)
    goal_f = goal.reshape(b, -1)
    d_obs = obs_f.shape[1]
    d_goal = goal_f.shape[1]
    h1 = w1.shape[1]
    h2 = w2.shape[1]
    d_out = w3.shape[1]
    assert w1.shape[0] == d_obs + d_goal

    # --- explicit operand dtype policy: weights -> compute_dtype once here;
    #     activations are cast in-kernel; biases / accumulation stay f32.
    w1c = w1.astype(compute_dtype)
    w1s = w1c[:d_obs]              # obs rows of W1
    w1g = w1c[d_obs:]              # goal rows of W1 (concat folded into 2 dots)
    w2c = w2.astype(compute_dtype)

    # Lane-pad the output layer to a multiple of 128 (unmasked writeback).
    d_out_p = _round_up(max(d_out, 128), 128)
    w3c = jnp.zeros((h2, d_out_p), compute_dtype).at[:, :d_out].set(
        w3.astype(compute_dtype))
    b3p = jnp.zeros((1, d_out_p), jnp.float32).at[:, :d_out].set(
        b3.astype(jnp.float32))
    b1r = b1.reshape(1, h1).astype(jnp.float32)
    b2r = b2.reshape(1, h2).astype(jnp.float32)

    # --- degenerate-batch guard only: pad to one full sublane group when
    #     B < 8 (cheap).  Larger ragged batches use Pallas partial blocks,
    #     so there is no pad / out[:b] round-trip of the big activation stream.
    bp = b
    if b < 8:
        bp = 8
        obs_f = jnp.pad(obs_f, ((0, bp - b), (0, 0)))
        goal_f = jnp.pad(goal_f, ((0, bp - b), (0, 0)))

    # --- batch-tile selection.
    TB_MAX = 2048                       # keeps v5e under its 16 MiB scoped-VMEM default
    VMEM_BUDGET = 12 * 1024 * 1024      # conservative budget for all generations
    in_row = 2 * (d_obs * obs_f.dtype.itemsize + d_goal * goal_f.dtype.itemsize)
    out_row = 2 * d_out_p * 4
    mid_row = 3 * max(h1, h2) * 4       # live f32 intermediates + bf16 copies (conservative)
    w_bytes = (jnp.dtype(compute_dtype).itemsize
               * ((d_obs + d_goal) * h1 + h1 * h2 + h2 * d_out_p)
               + 4 * (h1 + h2 + d_out_p))
    tb_cap = max(8, ((VMEM_BUDGET - w_bytes) // (in_row + out_row + mid_row)) // 8 * 8)

    if tb is None:
        tb = min(TB_MAX, tb_cap)
        if bp >= 16:
            # Guarantee >= 2 grid steps so v7x megacore sharding engages.
            tb = min(tb, _round_up(pl.cdiv(bp, 2), 8))
        else:
            tb = _round_up(bp, 8)
    tb = max(8, _round_up(int(tb), 8))

    grid = (pl.cdiv(bp, tb),)

    flops = 2 * bp * ((d_obs + d_goal) * h1 + h1 * h2 + h2 * d_out_p)
    bytes_accessed = int(
        obs_f.size * obs_f.dtype.itemsize
        + goal_f.size * goal_f.dtype.itemsize
        + w_bytes
        + bp * d_out_p * 4)

    out = pl.pallas_call(
        functools.partial(_policy_mlp_kernel, compute_dtype=compute_dtype),
        out_shape=jax.ShapeDtypeStruct((bp, d_out_p), jnp.float32),
        grid_spec=pltpu.PrefetchScalarGridSpec(
            num_scalar_prefetch=0,
            grid=grid,
            in_specs=[
                pl.BlockSpec((tb, d_obs), lambda i: (i, 0)),    # streamed obs tile
                pl.BlockSpec((tb, d_goal), lambda i: (i, 0)),   # streamed goal tile
                pl.BlockSpec((d_obs, h1), lambda i: (0, 0)),    # resident weights
                pl.BlockSpec((d_goal, h1), lambda i: (0, 0)),
                pl.BlockSpec((1, h1), lambda i: (0, 0)),
                pl.BlockSpec((h1, h2), lambda i: (0, 0)),
                pl.BlockSpec((1, h2), lambda i: (0, 0)),
                pl.BlockSpec((h2, d_out_p), lambda i: (0, 0)),
                pl.BlockSpec((1, d_out_p), lambda i: (0, 0)),
            ],
            out_specs=pl.BlockSpec((tb, d_out_p), lambda i: (i, 0)),
        ),
        compiler_params=pltpu.CompilerParams(
            dimension_semantics=("parallel",),      # megacore sharding on v7x
        ),
        cost_estimate=pl.CostEstimate(
            flops=flops, transcendentals=0, bytes_accessed=bytes_accessed),
    )(obs_f, goal_f, w1s, w1g, b1r, w2c, b2r, w3c, b3p)

    # Tiny wrapper-side slices: lane de-pad always, row de-pad only if B < 8.
    return out[:b, :d_out]


def _reference(obs, goal, params):
    """Pure-JAX f32 replica of the PyTorch forward, for verification."""
    w1, b1, w2, b2, w3, b3 = params
    b = obs.shape[0]
    x = jnp.concatenate([obs.reshape(b, -1), goal.reshape(b, -1)], axis=1)
    hp = jax.lax.Precision.HIGHEST
    h = jax.nn.relu(jnp.dot(x, w1, precision=hp) + b1)
    h = jax.nn.relu(jnp.dot(h, w2, precision=hp) + b2)
    return jnp.dot(h, w3, precision=hp) + b3


if __name__ == "__main__":
    key = jax.random.PRNGKey(0)

    # Small shapes implied by the module: batch=2, obs is a flattened
    # observation (image-like (4, 8)), goal dim 32, FCNetwork layers=[256, 256],
    # n_dims=2, granularity=4 -> dim_out=8.
    B = 2
    OBS_SHAPE = (4, 8)
    GOAL_DIM = 32
    N_DIMS, GRANULARITY = 2, 4
    H1, H2 = 256, 256
    D_IN = int(np.prod(OBS_SHAPE)) + GOAL_DIM
    D_OUT = N_DIMS * GRANULARITY

    ks = jax.random.split(key, 10)
    obs = jax.random.normal(ks[0], (B,) + OBS_SHAPE, dtype=jnp.float32)
    goal = jax.random.normal(ks[1], (B, GOAL_DIM), dtype=jnp.float32)
    w1 = jax.random.normal(ks[2], (D_IN, H1), dtype=jnp.float32) * 0.05
    b1 = jax.random.normal(ks[3], (H1,), dtype=jnp.float32) * 0.05
    w2 = jax.random.normal(ks[4], (H1, H2), dtype=jnp.float32) * 0.05
    b2 = jax.random.normal(ks[5], (H2,), dtype=jnp.float32) * 0.05
    w3 = jax.random.normal(ks[6], (H2, D_OUT), dtype=jnp.float32) * 0.05
    b3 = jax.random.normal(ks[7], (D_OUT,), dtype=jnp.float32) * 0.05
    params = (w1, b1, w2, b2, w3, b3)

    # Intentional tolerance: matmul operands are bf16 (f32 accumulation),
    # so we compare against the f32 reference at ~1e-2 absolute.
    RTOL, ATOL = 2e-2, 2e-2

    out = goal_policy_forward(obs, goal, params)
    out = jax.block_until_ready(out)
    ref = _reference(obs, goal, params)
    assert out.shape == (B, D_OUT)
    np.testing.assert_allclose(np.asarray(out), np.asarray(ref), rtol=RTOL, atol=ATOL)

    # Second check: batch large enough to exercise the >=2-grid-step path
    # (megacore sharding on v7x) with multiple streamed tiles.
    B2 = 32
    obs2 = jax.random.normal(ks[8], (B2,) + OBS_SHAPE, dtype=jnp.float32)
    goal2 = jax.random.normal(ks[9], (B2, GOAL_DIM), dtype=jnp.float32)
    out2 = jax.block_until_ready(goal_policy_forward(obs2, goal2, params))
    ref2 = _reference(obs2, goal2, params)
    assert out2.shape == (B2, D_OUT)
    np.testing.assert_allclose(np.asarray(out2), np.asarray(ref2), rtol=RTOL, atol=ATOL)

    print("KERNEL_OK")
</pallas_src>

<mosaic_0001>
module attributes {stable_mosaic.version = 11 : i64} {
  func.func @_policy_mlp_kernel(%arg0: i32, %arg1: memref<8x32xf32, #tpu.memory_space<vmem>>, %arg2: memref<8x32xf32, #tpu.memory_space<vmem>>, %arg3: memref<32x256xbf16, #tpu.memory_space<vmem>>, %arg4: memref<32x256xbf16, #tpu.memory_space<vmem>>, %arg5: memref<1x256xf32, #tpu.memory_space<vmem>>, %arg6: memref<256x256xbf16, #tpu.memory_space<vmem>>, %arg7: memref<1x256xf32, #tpu.memory_space<vmem>>, %arg8: memref<256x128xbf16, #tpu.memory_space<vmem>>, %arg9: memref<1x128xf32, #tpu.memory_space<vmem>>, %arg10: memref<8x128xf32, #tpu.memory_space<vmem>>) attributes {dimension_semantics = [#tpu.dimension_semantics<parallel>], iteration_bounds = array<i64: 1>, scalar_prefetch = 0 : i64, scratch_operands = 0 : i64, tpu.core_type = #tpu.core_type<tc>, window_params = [{transform_indices = @transform_0, window_bounds = array<i64: 8, 32>}, {transform_indices = @transform_1, window_bounds = array<i64: 8, 32>}, {pipeline_mode = #tpu.pipeline_mode<synchronous>, transform_indices = @transform_2, window_bounds = array<i64: 32, 256>}, {pipeline_mode = #tpu.pipeline_mode<synchronous>, transform_indices = @transform_3, window_bounds = array<i64: 32, 256>}, {pipeline_mode = #tpu.pipeline_mode<synchronous>, transform_indices = @transform_4, window_bounds = array<i64: 1, 256>}, {pipeline_mode = #tpu.pipeline_mode<synchronous>, transform_indices = @transform_5, window_bounds = array<i64: 256, 256>}, {pipeline_mode = #tpu.pipeline_mode<synchronous>, transform_indices = @transform_6, window_bounds = array<i64: 1, 256>}, {pipeline_mode = #tpu.pipeline_mode<synchronous>, transform_indices = @transform_7, window_bounds = array<i64: 256, 128>}, {pipeline_mode = #tpu.pipeline_mode<synchronous>, transform_indices = @transform_8, window_bounds = array<i64: 1, 128>}, {transform_indices = @transform_9, window_bounds = array<i64: 8, 128>}]} {
    %c0 = arith.constant 0 : index
    %c0_0 = arith.constant 0 : index
    %0 = vector.load %arg1[%c0, %c0_0] : memref<8x32xf32, #tpu.memory_space<vmem>>, vector<8x32xf32>
    %1 = arith.truncf %0 : vector<8x32xf32> to vector<8x32xbf16>
    %c0_1 = arith.constant 0 : index
    %c0_2 = arith.constant 0 : index
    %2 = vector.load %arg2[%c0_1, %c0_2] : memref<8x32xf32, #tpu.memory_space<vmem>>, vector<8x32xf32>
    %3 = arith.truncf %2 : vector<8x32xf32> to vector<8x32xbf16>
    %c0_3 = arith.constant 0 : index
    %c0_4 = arith.constant 0 : index
    %4 = vector.load %arg3[%c0_3, %c0_4] : memref<32x256xbf16, #tpu.memory_space<vmem>>, vector<32x256xbf16>
    %cst = arith.constant dense<0.000000e+00> : vector<8x256xf32>
    %5 = tpu.matmul %1, %4, %cst {dimension_numbers = #tpu.dot_dimension_numbers<[1], [0], [0], [1], [0, 0, 1, 1], [], []>} : vector<8x32xbf16>, vector<32x256xbf16>, vector<8x256xf32> -> vector<8x256xf32>
    %c0_5 = arith.constant 0 : index
    %c0_6 = arith.constant 0 : index
    %6 = vector.load %arg4[%c0_5, %c0_6] : memref<32x256xbf16, #tpu.memory_space<vmem>>, vector<32x256xbf16>
    %cst_7 = arith.constant dense<0.000000e+00> : vector<8x256xf32>
    %7 = tpu.matmul %3, %6, %cst_7 {dimension_numbers = #tpu.dot_dimension_numbers<[1], [0], [0], [1], [0, 0, 1, 1], [], []>} : vector<8x32xbf16>, vector<32x256xbf16>, vector<8x256xf32> -> vector<8x256xf32>
    %8 = arith.addf %5, %7 : vector<8x256xf32>
    %c0_8 = arith.constant 0 : index
    %c0_9 = arith.constant 0 : index
    %9 = vector.load %arg5[%c0_8, %c0_9] : memref<1x256xf32, #tpu.memory_space<vmem>>, vector<1x256xf32>
    %10 = vector.broadcast %9 : vector<1x256xf32> to vector<8x256xf32>
    %11 = arith.addf %8, %10 : vector<8x256xf32>
    %cst_10 = arith.constant 0.000000e+00 : f32
    %12 = vector.broadcast %cst_10 : f32 to vector<8x256xf32>
    %13 = arith.maximumf %11, %12 : vector<8x256xf32>
    %14 = arith.truncf %13 : vector<8x256xf32> to vector<8x256xbf16>
    %c0_11 = arith.constant 0 : index
    %c0_12 = arith.constant 0 : index
    %15 = vector.load %arg6[%c0_11, %c0_12] : memref<256x256xbf16, #tpu.memory_space<vmem>>, vector<256x256xbf16>
    %cst_13 = arith.constant dense<0.000000e+00> : vector<8x256xf32>
    %16 = tpu.matmul %14, %15, %cst_13 {dimension_numbers = #tpu.dot_dimension_numbers<[1], [0], [0], [1], [0, 0, 1, 1], [], []>} : vector<8x256xbf16>, vector<256x256xbf16>, vector<8x256xf32> -> vector<8x256xf32>
    %c0_14 = arith.constant 0 : index
    %c0_15 = arith.constant 0 : index
    %17 = vector.load %arg7[%c0_14, %c0_15] : memref<1x256xf32, #tpu.memory_space<vmem>>, vector<1x256xf32>
    %18 = vector.broadcast %17 : vector<1x256xf32> to vector<8x256xf32>
    %19 = arith.addf %16, %18 : vector<8x256xf32>
    %cst_16 = arith.constant 0.000000e+00 : f32
    %20 = vector.broadcast %cst_16 : f32 to vector<8x256xf32>
    %21 = arith.maximumf %19, %20 : vector<8x256xf32>
    %22 = arith.truncf %21 : vector<8x256xf32> to vector<8x256xbf16>
    %c0_17 = arith.constant 0 : index
    %c0_18 = arith.constant 0 : index
    %23 = vector.load %arg8[%c0_17, %c0_18] : memref<256x128xbf16, #tpu.memory_space<vmem>>, vector<256x128xbf16>
    %cst_19 = arith.constant dense<0.000000e+00> : vector<8x128xf32>
    %24 = tpu.matmul %22, %23, %cst_19 {dimension_numbers = #tpu.dot_dimension_numbers<[1], [0], [0], [1], [0, 0, 1, 1], [], []>} : vector<8x256xbf16>, vector<256x128xbf16>, vector<8x128xf32> -> vector<8x128xf32>
    %c0_20 = arith.constant 0 : index
    %c0_21 = arith.constant 0 : index
    %25 = vector.load %arg9[%c0_20, %c0_21] : memref<1x128xf32, #tpu.memory_space<vmem>>, vector<1x128xf32>
    %26 = vector.broadcast %25 : vector<1x128xf32> to vector<8x128xf32>
    %27 = arith.addf %24, %26 : vector<8x128xf32>
    %c0_22 = arith.constant 0 : index
    %c0_23 = arith.constant 0 : index
    %28 = vector.load %arg10[%c0_22, %c0_23] : memref<8x128xf32, #tpu.memory_space<vmem>>, vector<8x128xf32>
    tpu.vector_store %arg10[%c0_22, %c0_23], %27 {strides = array<i32>} : memref<8x128xf32, #tpu.memory_space<vmem>>, vector<8x128xf32>,
    return
  }
  func.func @transform_0(%arg0: i32) -> (i32, i32) {
    %c0_i32 = arith.constant 0 : i32
    %c0_i32_0 = arith.constant 0 : i32
    return %arg0, %c0_i32 : i32, i32
  }
  func.func @transform_1(%arg0: i32) -> (i32, i32) {
    %c0_i32 = arith.constant 0 : i32
    %c0_i32_0 = arith.constant 0 : i32
    return %arg0, %c0_i32 : i32, i32
  }
  func.func @transform_2(%arg0: i32) -> (i32, i32) {
    %c0_i32 = arith.constant 0 : i32
    %c0_i32_0 = arith.constant 0 : i32
    %c0_i32_1 = arith.constant 0 : i32
    return %c0_i32, %c0_i32_0 : i32, i32
  }
  func.func @transform_3(%arg0: i32) -> (i32, i32) {
    %c0_i32 = arith.constant 0 : i32
    %c0_i32_0 = arith.constant 0 : i32
    %c0_i32_1 = arith.constant 0 : i32
    return %c0_i32, %c0_i32_0 : i32, i32
  }
  func.func @transform_4(%arg0: i32) -> (i32, i32) {
    %c0_i32 = arith.constant 0 : i32
    %c0_i32_0 = arith.constant 0 : i32
    %c0_i32_1 = arith.constant 0 : i32
    return %c0_i32, %c0_i32_0 : i32, i32
  }
  func.func @transform_5(%arg0: i32) -> (i32, i32) {
    %c0_i32 = arith.constant 0 : i32
    %c0_i32_0 = arith.constant 0 : i32
    %c0_i32_1 = arith.constant 0 : i32
    return %c0_i32, %c0_i32_0 : i32, i32
  }
  func.func @transform_6(%arg0: i32) -> (i32, i32) {
    %c0_i32 = arith.constant 0 : i32
    %c0_i32_0 = arith.constant 0 : i32
    %c0_i32_1 = arith.constant 0 : i32
    return %c0_i32, %c0_i32_0 : i32, i32
  }
  func.func @transform_7(%arg0: i32) -> (i32, i32) {
    %c0_i32 = arith.constant 0 : i32
    %c0_i32_0 = arith.constant 0 : i32
    %c0_i32_1 = arith.constant 0 : i32
    return %c0_i32, %c0_i32_0 : i32, i32
  }
  func.func @transform_8(%arg0: i32) -> (i32, i32) {
    %c0_i32 = arith.constant 0 : i32
    %c0_i32_0 = arith.constant 0 : i32
    %c0_i32_1 = arith.constant 0 : i32
    return %c0_i32, %c0_i32_0 : i32, i32
  }
  func.func @transform_9(%arg0: i32) -> (i32, i32) {
    %c0_i32 = arith.constant 0 : i32
    %c0_i32_0 = arith.constant 0 : i32
    return %arg0, %c0_i32 : i32, i32
  }
}

</mosaic_0001>

<llo_original>
// kernel: tpu_custom_call.1
$region0: #{tpu_custom_call.1}
  #allocation0 [shape = 'u32[]', space=smem, size = 0x4, offset = 0x4, fixed_abs, tag = 'smem constant byte address 0x4 - core index']
  #allocation1 [shape = 'u32[144,128]{1,0:T(1,128)}', space=vmem, size = 0x12000, scoped, tag = 'internal scratch']
  %s0 = inlined_call_operand.hbm [shape: f32[8,32], index: 0, kind: input, shape index: {}]
  %s1 = inlined_call_operand.hbm [shape: f32[8,32], index: 1, kind: input, shape index: {}]
  %s2 = inlined_call_operand.hbm [shape: bf16[32,256], index: 2, kind: input, shape index: {}]
  %s3 = inlined_call_operand.hbm [shape: bf16[32,256], index: 3, kind: input, shape index: {}]
  %s4 = inlined_call_operand.vmem [shape: f32[1,256], index: 4, kind: input, shape index: {}]
  %s5 = inlined_call_operand.hbm [shape: bf16[256,256], index: 5, kind: input, shape index: {}]
  %s6 = inlined_call_operand.vmem [shape: f32[1,256], index: 6, kind: input, shape index: {}]
  %s7 = inlined_call_operand.hbm [shape: bf16[256,128], index: 7, kind: input, shape index: {}]
  %s8 = inlined_call_operand.vmem [shape: f32[1,128], index: 8, kind: input, shape index: {}]
  %s9 = inlined_call_operand.hbm [shape: f32[8,128], index: 9, kind: output, shape index: {}]
  %s10 = sld [smem:[#allocation0]]
  $region70: #{tpu_custom_call.1} parent=0
    _
  %s12 = ssub.s32 1, %s10
  %s13 = scalar_select 0, %s12, %s10
  $region1: #{tpu_custom_call.1} parent=0
    #allocation2 [shape = 'u8[4096]{0}', space=vmem, size = 0x1000, scoped, tag = 'input window, operand 0, single buffered']
    #allocation3 [shape = 's32[1]{0}', space=sflag, size = 0x4, scoped, tag = 'scoped memory for tpu_custom_call.1']
    #allocation4 [shape = 's32[1]{0}', space=sflag, size = 0x4, scoped, tag = 'scoped memory for tpu_custom_call.1']
    #allocation5 [shape = 'u8[4096]{0}', space=vmem, size = 0x1000, scoped, tag = 'input window, operand 1, single buffered']
    #allocation6 [shape = 's32[1]{0}', space=sflag, size = 0x4, scoped, tag = 'scoped memory for tpu_custom_call.1']
    #allocation7 [shape = 'u8[16384]{0}', space=vmem, size = 0x4000, scoped, tag = 'input window, operand 2, single buffered']
    #allocation8 [shape = 'u8[16384]{0}', space=vmem, size = 0x4000, scoped, tag = 'input window, operand 3, single buffered']
    #allocation9 [shape = 's32[1]{0}', space=sflag, size = 0x4, scoped, tag = 'scoped memory for tpu_custom_call.1']
    #allocation10 [shape = 'u8[131072]{0}', space=vmem, size = 0x20000, scoped, tag = 'input window, operand 5, single buffered']
    #allocation11 [shape = 'u8[65536]{0}', space=vmem, size = 0x10000, scoped, tag = 'input window, operand 7, single buffered']
    #allocation12 [shape = 's32[1]{0}', space=sflag, size = 0x4, scoped, tag = 'scoped memory for tpu_custom_call.1']
    #allocation13 [shape = 'u8[4096]{0}', space=vmem, size = 0x1000, scoped, tag = 'output window, operand 0, single buffered']
    %14 = vsyncpa [#allocation3], 0
    %15 = vsyncpa [#allocation6], 0
    %16 = vsyncpa [#allocation9], 0
    %17 = vsyncpa [#allocation12], 0
    %18 = vsyncpa [#allocation4], 0
    // Predicated region
    $region2: #{tpu_custom_call.1} parent=1 // pred_check
      _
    $region3: #{tpu_custom_call.1} parent=1 // pred_check_branch
      %20 = sbr.rel (0) target = $region5
    $region4: #{tpu_custom_call.1} parent=1 // pred_region
      %s22 = ssub.s32 128, 128
      %23 = vsyncadd [#allocation3], %s22
      %s25 = sshll.u32 [#allocation2], 4
      %s26 = int_to_ptr.vmem [resolvable:$true] %s25
      %28 = dma.hbm_to_vmem [thread:$0]  %s0, 128, %s26, [#allocation3]
    $region5: #{tpu_custom_call.1} parent=1 // pred_fallthru
      _
    // Predicated region
    $region6: #{tpu_custom_call.1} parent=1 // pred_check
      _
    $region7: #{tpu_custom_call.1} parent=1 // pred_check_branch
      %30 = sbr.rel (0) target = $region9
    $region8: #{tpu_custom_call.1} parent=1 // pred_region
      %s32 = ssub.s32 128, 128
      %33 = vsyncadd [#allocation6], %s32
      %s35 = sshll.u32 [#allocation5], 4
      %s36 = int_to_ptr.vmem [resolvable:$true] %s35
      %38 = dma.hbm_to_vmem [thread:$0]  %s1, 128, %s36, [#allocation6]
    $region9: #{tpu_custom_call.1} parent=1 // pred_fallthru
      _
    // Predicated region
    $region10: #{tpu_custom_call.1} parent=1 // pred_check
      _
    $region11: #{tpu_custom_call.1} parent=1 // pred_check_branch
      %40 = sbr.rel (0) target = $region13
    $region12: #{tpu_custom_call.1} parent=1 // pred_region
      %s42 = ssub.s32 512, 512
      %43 = vsyncadd [#allocation6], %s42
      %s44 = sshll.u32 [#allocation7], 4
      %s45 = int_to_ptr.vmem [resolvable:$true] %s44
      %50 = dma.hbm_to_vmem [thread:$0]  %s2, 512, %s45, [#allocation6], 128, 128, 8
    $region13: #{tpu_custom_call.1} parent=1 // pred_fallthru
      _
    // Predicated region
    $region14: #{tpu_custom_call.1} parent=1 // pred_check
      _
    $region15: #{tpu_custom_call.1} parent=1 // pred_check_branch
      %52 = sbr.rel (0) target = $region17
    $region16: #{tpu_custom_call.1} parent=1 // pred_region
      %s54 = ssub.s32 512, 512
      %55 = vsyncadd [#allocation9], %s54
      %s56 = sshll.u32 [#allocation8], 4
      %s57 = int_to_ptr.vmem [resolvable:$true] %s56
      %62 = dma.hbm_to_vmem [thread:$0]  %s3, 512, %s57, [#allocation9], 128, 128, 8
    $region17: #{tpu_custom_call.1} parent=1 // pred_fallthru
      _
    // Predicated region
    $region18: #{tpu_custom_call.1} parent=1 // pred_check
      _
    $region19: #{tpu_custom_call.1} parent=1 // pred_check_branch
      %64 = sbr.rel (0) target = $region21
    $region20: #{tpu_custom_call.1} parent=1 // pred_region
      _
    $region21: #{tpu_custom_call.1} parent=1 // pred_fallthru
      _
    // Predicated region
    $region22: #{tpu_custom_call.1} parent=1 // pred_check
      _
    $region23: #{tpu_custom_call.1} parent=1 // pred_check_branch
      %66 = sbr.rel (0) target = $region25
    $region24: #{tpu_custom_call.1} parent=1 // pred_region
      %s68 = ssub.s32 4096, 4096
      %69 = vsyncadd [#allocation9], %s68
      %s70 = sshll.u32 [#allocation10], 4
      %s71 = int_to_ptr.vmem [resolvable:$true] %s70
      %76 = dma.hbm_to_vmem [thread:$0]  %s5, 4096, %s71, [#allocation9], 128, 128, 8
    $region25: #{tpu_custom_call.1} parent=1 // pred_fallthru
      _
    // Predicated region
    $region26: #{tpu_custom_call.1} parent=1 // pred_check
      _
    $region27: #{tpu_custom_call.1} parent=1 // pred_check_branch
      %78 = sbr.rel (0) target = $region29
    $region28: #{tpu_custom_call.1} parent=1 // pred_region
      _
    $region29: #{tpu_custom_call.1} parent=1 // pred_fallthru
      _
    // Predicated region
    $region30: #{tpu_custom_call.1} parent=1 // pred_check
      _
    $region31: #{tpu_custom_call.1} parent=1 // pred_check_branch
      %80 = sbr.rel (0) target = $region33
    $region32: #{tpu_custom_call.1} parent=1 // pred_region
      %s82 = ssub.s32 2048, 2048
      %83 = vsyncadd [#allocation12], %s82
      %s84 = sshll.u32 [#allocation11], 4
      %s85 = int_to_ptr.vmem [resolvable:$true] %s84
      %90 = dma.hbm_to_vmem [thread:$0]  %s7, 2048, %s85, [#allocation12], 64, 64, 4
    $region33: #{tpu_custom_call.1} parent=1 // pred_fallthru
      _
    // Predicated region
    $region34: #{tpu_custom_call.1} parent=1 // pred_check
      _
    $region35: #{tpu_custom_call.1} parent=1 // pred_check_branch
      %92 = sbr.rel (0) target = $region37
    $region36: #{tpu_custom_call.1} parent=1 // pred_region
      _
    $region37: #{tpu_custom_call.1} parent=1 // pred_fallthru
      _
    // Predicated region
    $region38: #{tpu_custom_call.1} parent=1 // pred_check
      _
    $region39: #{tpu_custom_call.1} parent=1 // pred_check_branch
      %94 = sbr.rel (0) target = $region41
    $region40: #{tpu_custom_call.1} parent=1 // pred_region
      %95 = dma.done [#allocation3], 128
    $region41: #{tpu_custom_call.1} parent=1 // pred_fallthru
      _
    // Predicated region
    $region42: #{tpu_custom_call.1} parent=1 // pred_check
      _
    $region43: #{tpu_custom_call.1} parent=1 // pred_check_branch
      %97 = sbr.rel (0) target = $region45
    $region44: #{tpu_custom_call.1} parent=1 // pred_region
      %98 = dma.done [#allocation6], 128
    $region45: #{tpu_custom_call.1} parent=1 // pred_fallthru
      _
    // Predicated region
    $region46: #{tpu_custom_call.1} parent=1 // pred_check
      _
    $region47: #{tpu_custom_call.1} parent=1 // pred_check_branch
      %100 = sbr.rel (0) target = $region49
    $region48: #{tpu_custom_call.1} parent=1 // pred_region
      %101 = dma.done [#allocation6], 512
    $region49: #{tpu_custom_call.1} parent=1 // pred_fallthru
      _
    // Predicated region
    $region50: #{tpu_custom_call.1} parent=1 // pred_check
      _
    $region51: #{tpu_custom_call.1} parent=1 // pred_check_branch
      %103 = sbr.rel (0) target = $region53
    $region52: #{tpu_custom_call.1} parent=1 // pred_region
      %104 = dma.done [#allocation9], 512
    $region53: #{tpu_custom_call.1} parent=1 // pred_fallthru
      _
    // Predicated region
    $region54: #{tpu_custom_call.1} parent=1 // pred_check
      _
    $region55: #{tpu_custom_call.1} parent=1 // pred_check_branch
      %106 = sbr.rel (0) target = $region57
    $region56: #{tpu_custom_call.1} parent=1 // pred_region
      %107 = dma.done [#allocation9], 4096
    $region57: #{tpu_custom_call.1} parent=1 // pred_fallthru
      _
    // Predicated region
    $region58: #{tpu_custom_call.1} parent=1 // pred_check
      _
    $region59: #{tpu_custom_call.1} parent=1 // pred_check_branch
      %109 = sbr.rel (0) target = $region61
    $region60: #{tpu_custom_call.1} parent=1 // pred_region
      %110 = dma.done [#allocation12], 2048
    $region61: #{tpu_custom_call.1} parent=1 // pred_fallthru
      _
    %v112 = vld [vmem:[#allocation2] sm:$0xff]
    %v113 = vpack.c.bf16 %v112, %v112
    %v114 = vld [vmem:[#allocation5] sm:$0xff]
    %v115 = vpack.c.bf16 %v114, %v114
    %v116 = vld [vmem:[#allocation7] sm:$0xff]
    %v117 = vld [vmem:[#allocation7 + $0x8] sm:$0xff]
    %v118 = vld [vmem:[#allocation7 + $0x10] sm:$0xff]
    %v119 = vld [vmem:[#allocation7 + $0x18] sm:$0xff]
    %v120 = vld [vmem:[#allocation8] sm:$0xff]
    %v121 = vld [vmem:[#allocation8 + $0x8] sm:$0xff]
    %v122 = vld [vmem:[#allocation8 + $0x10] sm:$0xff]
    %v123 = vld [vmem:[#allocation8 + $0x18] sm:$0xff]
    %v128 = vunpack.c.l.b16 %v120
    %v129 = vunpack.c.h.b16 %v120
    %v130 = vunpack.c.l.b16 %v121
    %v131 = vunpack.c.h.b16 %v121
    %v132 = vunpack.c.l.b16 %v122
    %v133 = vunpack.c.h.b16 %v122
    %v134 = vunpack.c.l.b16 %v123
    %v135 = vunpack.c.h.b16 %v123
    %v136 = vpack.c.b16 %v130, %v128
    %v137 = vpack.c.b16 %v131, %v129
    %v138 = vpack.c.b16 %v134, %v132
    %v139 = vpack.c.b16 %v135, %v133
    %vm144 = vcmask 261120
    %v146 = vsel %vm144, %v115, 0
    %148 = vmatprep.subr.bf16.mxu0 %v137
    %149 = vmatpush1.bf16.msra.mxu0 %v136
    %150 = vmatprep.subr.bf16.mxu0 %v139
    %151 = vmatpush1.bf16.msra.mxu0 %v138
    %152 = vmatprep.subr.bf16.mxu0 0
    %153 = vmatpush1.bf16.msra.mxu0 0
    %154 = vmatprep.subr.bf16.mxu0 0
    %155 = vmatpush1.bf16.msra.mxu0 0
    %156 = vmatprep.subr.bf16.mxu0 0
    %157 = vmatpush1.bf16.msra.mxu0 0
    %158 = vmatprep.subr.bf16.mxu0 0
    %159 = vmatpush1.bf16.msra.mxu0 0
    %160 = vmatprep.subr.bf16.mxu0 0
    %161 = vmatpush1.bf16.msra.mxu0 0
    %162 = vmatprep.subr.bf16.mxu0 0
    %163 = vmatpush1.bf16.msra.mxu0 0
    %164 = vmatprep.subr.bf16.mxu0 0
    %165 = vmatpush1.bf16.msra.mxu0 0
    %166 = vmatprep.subr.bf16.mxu0 0
    %167 = vmatpush1.bf16.msra.mxu0 0
    %168 = vmatprep.subr.bf16.mxu0 0
    %169 = vmatpush1.bf16.msra.mxu0 0
    %170 = vmatprep.subr.bf16.mxu0 0
    %171 = vmatpush1.bf16.msra.mxu0 0
    %172 = vmatprep.subr.bf16.mxu0 0
    %173 = vmatpush1.bf16.msra.mxu0 0
    %174 = vmatprep.subr.bf16.mxu0 0
    %175 = vmatpush1.bf16.msra.mxu0 0
    %176 = vmatprep.subr.bf16.mxu0 0
    %177 = vmatpush1.bf16.msra.mxu0 0
    %178 = vmatprep.subr.bf16.mxu0 0
    %179 = vmatpush1.bf16.msra.mxu0 0
    %180 = vmatprep.mubr.bf16.mxu0 0
    %181 = vmatmul.mubr.bf16.gmra.mrb[0].mxu0 %v146
    %v182 = vpop.f32.mrb[0].mxu0
    %v183 = vadd.f32 0.0, %v182
    %v184 = vpop.f32.mrb[0].mxu0
    %v185 = vadd.f32 0.0, %v184
    %v186 = vpop.f32.mrb[0].mxu0
    %v187 = vpop.f32.mrb[0].mxu0
    %188 = vdwg.mxu0
    %v193 = vunpack.c.l.b16 %v116
    %v194 = vunpack.c.h.b16 %v116
    %v195 = vunpack.c.l.b16 %v117
    %v196 = vunpack.c.h.b16 %v117
    %v197 = vunpack.c.l.b16 %v118
    %v198 = vunpack.c.h.b16 %v118
    %v199 = vunpack.c.l.b16 %v119
    %v200 = vunpack.c.h.b16 %v119
    %v201 = vpack.c.b16 %v195, %v193
    %v202 = vpack.c.b16 %v196, %v194
    %v203 = vpack.c.b16 %v199, %v197
    %v204 = vpack.c.b16 %v200, %v198
    %v210 = vsel %vm144, %v113, 0
    %212 = vmatprep.subr.bf16.mxu0 %v202
    %213 = vmatpush1.bf16.msra.mxu0 %v201
    %214 = vmatprep.subr.bf16.mxu0 %v204
    %215 = vmatpush1.bf16.msra.mxu0 %v203
    %216 = vmatprep.subr.bf16.mxu0 0
    %217 = vmatpush1.bf16.msra.mxu0 0
    %218 = vmatprep.subr.bf16.mxu0 0
    %219 = vmatpush1.bf16.msra.mxu0 0
    %220 = vmatprep.subr.bf16.mxu0 0
    %221 = vmatpush1.bf16.msra.mxu0 0
    %222 = vmatprep.subr.bf16.mxu0 0
    %223 = vmatpush1.bf16.msra.mxu0 0
    %224 = vmatprep.subr.bf16.mxu0 0
    %225 = vmatpush1.bf16.msra.mxu0 0
    %226 = vmatprep.subr.bf16.mxu0 0
    %227 = vmatpush1.bf16.msra.mxu0 0
    %228 = vmatprep.subr.bf16.mxu0 0
    %229 = vmatpush1.bf16.msra.mxu0 0
    %230 = vmatprep.subr.bf16.mxu0 0
    %231 = vmatpush1.bf16.msra.mxu0 0
    %232 = vmatprep.subr.bf16.mxu0 0
    %233 = vmatpush1.bf16.msra.mxu0 0
    %234 = vmatprep.subr.bf16.mxu0 0
    %235 = vmatpush1.bf16.msra.mxu0 0
    %236 = vmatprep.subr.bf16.mxu0 0
    %237 = vmatpush1.bf16.msra.mxu0 0
    %238 = vmatprep.subr.bf16.mxu0 0
    %239 = vmatpush1.bf16.msra.mxu0 0
    %240 = vmatprep.subr.bf16.mxu0 0
    %241 = vmatpush1.bf16.msra.mxu0 0
    %242 = vmatprep.subr.bf16.mxu0 0
    %243 = vmatpush1.bf16.msra.mxu0 0
    %244 = vmatprep.mubr.bf16.mxu0 0
    %245 = vmatmul.mubr.bf16.gmra.mrb[0].mxu0 %v210
    %v246 = vpop.f32.mrb[0].mxu0
    %v247 = vadd.f32 %v183, %v246
    %v248 = vpop.f32.mrb[0].mxu0
    %v249 = vadd.f32 %v185, %v248
    %v250 = vpop.f32.mrb[0].mxu0
    %v251 = vpop.f32.mrb[0].mxu0
    %252 = vdwg.mxu0
    %v253 = vld [vmem:[%s4] sm:$0x3]
    %v255 = vlaneseq
    %v256 = vshrl.u32 %v255, 7
    %v257 = vsub.s32 0, %v256
    %v258 = vrot.slane %v253, %v257
    %v259 = vlaneseq
    %v260 = vshrl.u32 %v259, 7
    %v261 = vsub.s32 1, %v260
    %v262 = vrot.slane %v253, %v261
    %v265 = vadd.f32 %v247, %v258
    %v266 = vadd.f32 %v249, %v262
    %v267 = vmax.f32 %v265, 0.0
    %v268 = vmax.f32 %v266, 0.0
    %v269 = vpack.c.bf16 %v267, %v267
    %v270 = vpack.c.bf16 %v268, %v268
    %v271 = vld [vmem:[#allocation10] sm:$0xff]
    %v272 = vld [vmem:[#allocation10 + $0x8] sm:$0xff]
    %v273 = vld [vmem:[#allocation10 + $0x10] sm:$0xff]
    %v274 = vld [vmem:[#allocation10 + $0x18] sm:$0xff]
    %v275 = vld [vmem:[#allocation10 + $0x20] sm:$0xff]
    %v276 = vld [vmem:[#allocation10 + $0x28] sm:$0xff]
    %v277 = vld [vmem:[#allocation10 + $0x30] sm:$0xff]
    %v278 = vld [vmem:[#allocation10 + $0x38] sm:$0xff]
    %v279 = vld [vmem:[#allocation10 + $0x40] sm:$0xff]
    %v280 = vld [vmem:[#allocation10 + $0x48] sm:$0xff]
    %v281 = vld [vmem:[#allocation10 + $0x50] sm:$0xff]
    %v282 = vld [vmem:[#allocation10 + $0x58] sm:$0xff]
    %v283 = vld [vmem:[#allocation10 + $0x60] sm:$0xff]
    %v284 = vld [vmem:[#allocation10 + $0x68] sm:$0xff]
    %v285 = vld [vmem:[#allocation10 + $0x70] sm:$0xff]
    %v286 = vld [vmem:[#allocation10 + $0x78] sm:$0xff]
    %v287 = vld [vmem:[#allocation10 + $0x80] sm:$0xff]
    %v288 = vld [vmem:[#allocation10 + $0x88] sm:$0xff]
    %v289 = vld [vmem:[#allocation10 + $0x90] sm:$0xff]
    %v290 = vld [vmem:[#allocation10 + $0x98] sm:$0xff]
    %v291 = vld [vmem:[#allocation10 + $0xa0] sm:$0xff]
    %v292 = vld [vmem:[#allocation10 + $0xa8] sm:$0xff]
    %v293 = vld [vmem:[#allocation10 + $0xb0] sm:$0xff]
    %v294 = vld [vmem:[#allocation10 + $0xb8] sm:$0xff]
    %v295 = vld [vmem:[#allocation10 + $0xc0] sm:$0xff]
    %v296 = vld [vmem:[#allocation10 + $0xc8] sm:$0xff]
    %v297 = vld [vmem:[#allocation10 + $0xd0] sm:$0xff]
    %v298 = vld [vmem:[#allocation10 + $0xd8] sm:$0xff]
    %v299 = vld [vmem:[#allocation10 + $0xe0] sm:$0xff]
    %v300 = vld [vmem:[#allocation10 + $0xe8] sm:$0xff]
    %v301 = vld [vmem:[#allocation10 + $0xf0] sm:$0xff]
    %v302 = vld [vmem:[#allocation10 + $0xf8] sm:$0xff]
    %v303 = vld [vmem:[%s6] sm:$0x3]
    %v305 = vlaneseq
    %v306 = vshrl.u32 %v305, 7
    %v307 = vsub.s32 0, %v306
    %v308 = vrot.slane %v303, %v307
    %v309 = vlaneseq
    %v310 = vshrl.u32 %v309, 7
    %v311 = vsub.s32 1, %v310
    %v312 = vrot.slane %v303, %v311
    %v347 = vunpack.c.l.b16 %v271
    %v348 = vunpack.c.h.b16 %v271
    %v349 = vunpack.c.l.b16 %v272
    %v350 = vunpack.c.h.b16 %v272
    %v351 = vunpack.c.l.b16 %v273
    %v352 = vunpack.c.h.b16 %v273
    %v353 = vunpack.c.l.b16 %v274
    %v354 = vunpack.c.h.b16 %v274
    %v355 = vunpack.c.l.b16 %v275
    %v356 = vunpack.c.h.b16 %v275
    %v357 = vunpack.c.l.b16 %v276
    %v358 = vunpack.c.h.b16 %v276
    %v359 = vunpack.c.l.b16 %v277
    %v360 = vunpack.c.h.b16 %v277
    %v361 = vunpack.c.l.b16 %v278
    %v362 = vunpack.c.h.b16 %v278
    %v363 = vunpack.c.l.b16 %v279
    %v364 = vunpack.c.h.b16 %v279
    %v365 = vunpack.c.l.b16 %v280
    %v366 = vunpack.c.h.b16 %v280
    %v367 = vunpack.c.l.b16 %v281
    %v368 = vunpack.c.h.b16 %v281
    %v369 = vunpack.c.l.b16 %v282
    %v370 = vunpack.c.h.b16 %v282
    %v371 = vunpack.c.l.b16 %v283
    %v372 = vunpack.c.h.b16 %v283
    %v373 = vunpack.c.l.b16 %v284
    %v374 = vunpack.c.h.b16 %v284
    %v375 = vunpack.c.l.b16 %v285
    %v376 = vunpack.c.h.b16 %v285
    %v377 = vunpack.c.l.b16 %v286
    %v378 = vunpack.c.h.b16 %v286
    %v379 = vunpack.c.l.b16 %v287
    %v380 = vunpack.c.h.b16 %v287
    %v381 = vunpack.c.l.b16 %v288
    %v382 = vunpack.c.h.b16 %v288
    %v383 = vunpack.c.l.b16 %v289
    %v384 = vunpack.c.h.b16 %v289
    %v385 = vunpack.c.l.b16 %v290
    %v386 = vunpack.c.h.b16 %v290
    %v387 = vunpack.c.l.b16 %v291
    %v388 = vunpack.c.h.b16 %v291
    %v389 = vunpack.c.l.b16 %v292
    %v390 = vunpack.c.h.b16 %v292
    %v391 = vunpack.c.l.b16 %v293
    %v392 = vunpack.c.h.b16 %v293
    %v393 = vunpack.c.l.b16 %v294
    %v394 = vunpack.c.h.b16 %v294
    %v395 = vunpack.c.l.b16 %v295
    %v396 = vunpack.c.h.b16 %v295
    %v397 = vunpack.c.l.b16 %v296
    %v398 = vunpack.c.h.b16 %v296
    %v399 = vunpack.c.l.b16 %v297
    %v400 = vunpack.c.h.b16 %v297
    %v401 = vunpack.c.l.b16 %v298
    %v402 = vunpack.c.h.b16 %v298
    %v403 = vunpack.c.l.b16 %v299
    %v404 = vunpack.c.h.b16 %v299
    %v405 = vunpack.c.l.b16 %v300
    %v406 = vunpack.c.h.b16 %v300
    %v407 = vunpack.c.l.b16 %v301
    %v408 = vunpack.c.h.b16 %v301
    %v409 = vunpack.c.l.b16 %v302
    %v410 = vunpack.c.h.b16 %v302
    %v411 = vpack.c.b16 %v349, %v347
    %v412 = vpack.c.b16 %v350, %v348
    %v413 = vpack.c.b16 %v353, %v351
    %v414 = vpack.c.b16 %v354, %v352
    %v415 = vpack.c.b16 %v357, %v355
    %v416 = vpack.c.b16 %v358, %v356
    %v417 = vpack.c.b16 %v361, %v359
    %v418 = vpack.c.b16 %v362, %v360
    %v419 = vpack.c.b16 %v365, %v363
    %v420 = vpack.c.b16 %v366, %v364
    %v421 = vpack.c.b16 %v369, %v367
    %v422 = vpack.c.b16 %v370, %v368
    %v423 = vpack.c.b16 %v373, %v371
    %v424 = vpack.c.b16 %v374, %v372
    %v425 = vpack.c.b16 %v377, %v375
    %v426 = vpack.c.b16 %v378, %v376
    %v427 = vpack.c.b16 %v381, %v379
    %v428 = vpack.c.b16 %v382, %v380
    %v429 = vpack.c.b16 %v385, %v383
    %v430 = vpack.c.b16 %v386, %v384
    %v431 = vpack.c.b16 %v389, %v387
    %v432 = vpack.c.b16 %v390, %v388
    %v433 = vpack.c.b16 %v393, %v391
    %v434 = vpack.c.b16 %v394, %v392
    %v435 = vpack.c.b16 %v397, %v395
    %v436 = vpack.c.b16 %v398, %v396
    %v437 = vpack.c.b16 %v401, %v399
    %v438 = vpack.c.b16 %v402, %v400
    %v439 = vpack.c.b16 %v405, %v403
    %v440 = vpack.c.b16 %v406, %v404
    %v441 = vpack.c.b16 %v409, %v407
    %v442 = vpack.c.b16 %v410, %v408
    %475 = vmatprep.subr.bf16.mxu0 %v412
    %476 = vmatpush1.bf16.msra.mxu0 %v411
    %477 = vmatprep.subr.bf16.mxu0 %v414
    %478 = vmatpush1.bf16.msra.mxu0 %v413
    %479 = vmatprep.subr.bf16.mxu0 %v416
    %480 = vmatpush1.bf16.msra.mxu0 %v415
    %481 = vmatprep.subr.bf16.mxu0 %v418
    %482 = vmatpush1.bf16.msra.mxu0 %v417
    %483 = vmatprep.subr.bf16.mxu0 %v420
    %484 = vmatpush1.bf16.msra.mxu0 %v419
    %485 = vmatprep.subr.bf16.mxu0 %v422
    %486 = vmatpush1.bf16.msra.mxu0 %v421
    %487 = vmatprep.subr.bf16.mxu0 %v424
    %488 = vmatpush1.bf16.msra.mxu0 %v423
    %489 = vmatprep.subr.bf16.mxu0 %v426
    %490 = vmatpush1.bf16.msra.mxu0 %v425
    %491 = vmatprep.subr.bf16.mxu0 %v428
    %492 = vmatpush1.bf16.msra.mxu0 %v427
    %493 = vmatprep.subr.bf16.mxu0 %v430
    %494 = vmatpush1.bf16.msra.mxu0 %v429
    %495 = vmatprep.subr.bf16.mxu0 %v432
    %496 = vmatpush1.bf16.msra.mxu0 %v431
    %497 = vmatprep.subr.bf16.mxu0 %v434
    %498 = vmatpush1.bf16.msra.mxu0 %v433
    %499 = vmatprep.subr.bf16.mxu0 %v436
    %500 = vmatpush1.bf16.msra.mxu0 %v435
    %501 = vmatprep.subr.bf16.mxu0 %v438
    %502 = vmatpush1.bf16.msra.mxu0 %v437
    %503 = vmatprep.subr.bf16.mxu0 %v440
    %504 = vmatpush1.bf16.msra.mxu0 %v439
    %505 = vmatprep.subr.bf16.mxu0 %v442
    %506 = vmatpush1.bf16.msra.mxu0 %v441
    %507 = vmatprep.mubr.bf16.mxu0 %v270
    %508 = vmatmul.mubr.bf16.gmra.mrb[0].mxu0 %v269
    %v509 = vpop.f32.mrb[0].mxu0
    %v510 = vadd.f32 %v308, %v509
    %v511 = vpop.f32.mrb[0].mxu0
    %v512 = vadd.f32 %v312, %v511
    %v513 = vpop.f32.mrb[0].mxu0
    %v514 = vpop.f32.mrb[0].mxu0
    %515 = vdwg.mxu0
    %v516 = vmax.f32 %v510, 0.0
    %v517 = vmax.f32 %v512, 0.0
    %v518 = vpack.c.bf16 %v516, %v516
    %v519 = vpack.c.bf16 %v517, %v517
    %v520 = vld [vmem:[#allocation11] sm:$0xf]
    %v521 = vld [vmem:[#allocation11 + $0x4] sm:$0xf]
    %v522 = vld [vmem:[#allocation11 + $0x8] sm:$0xf]
    %v523 = vld [vmem:[#allocation11 + $0xc] sm:$0xf]
    %v524 = vld [vmem:[#allocation11 + $0x10] sm:$0xf]
    %v525 = vld [vmem:[#allocation11 + $0x14] sm:$0xf]
    %v526 = vld [vmem:[#allocation11 + $0x18] sm:$0xf]
    %v527 = vld [vmem:[#allocation11 + $0x1c] sm:$0xf]
    %v528 = vld [vmem:[#allocation11 + $0x20] sm:$0xf]
    %v529 = vld [vmem:[#allocation11 + $0x24] sm:$0xf]
    %v530 = vld [vmem:[#allocation11 + $0x28] sm:$0xf]
    %v531 = vld [vmem:[#allocation11 + $0x2c] sm:$0xf]
    %v532 = vld [vmem:[#allocation11 + $0x30] sm:$0xf]
    %v533 = vld [vmem:[#allocation11 + $0x34] sm:$0xf]
    %v534 = vld [vmem:[#allocation11 + $0x38] sm:$0xf]
    %v535 = vld [vmem:[#allocation11 + $0x3c] sm:$0xf]
    %v536 = vld [vmem:[#allocation11 + $0x40] sm:$0xf]
    %v537 = vld [vmem:[#allocation11 + $0x44] sm:$0xf]
    %v538 = vld [vmem:[#allocation11 + $0x48] sm:$0xf]
    %v539 = vld [vmem:[#allocation11 + $0x4c] sm:$0xf]
    %v540 = vld [vmem:[#allocation11 + $0x50] sm:$0xf]
    %v541 = vld [vmem:[#allocation11 + $0x54] sm:$0xf]
    %v542 = vld [vmem:[#allocation11 + $0x58] sm:$0xf]
    %v543 = vld [vmem:[#allocation11 + $0x5c] sm:$0xf]
    %v544 = vld [vmem:[#allocation11 + $0x60] sm:$0xf]
    %v545 = vld [vmem:[#allocation11 + $0x64] sm:$0xf]
    %v546 = vld [vmem:[#allocation11 + $0x68] sm:$0xf]
    %v547 = vld [vmem:[#allocation11 + $0x6c] sm:$0xf]
    %v548 = vld [vmem:[#allocation11 + $0x70] sm:$0xf]
    %v549 = vld [vmem:[#allocation11 + $0x74] sm:$0xf]
    %v550 = vld [vmem:[#allocation11 + $0x78] sm:$0xf]
    %v551 = vld [vmem:[#allocation11 + $0x7c] sm:$0xf]
    %v552 = vld [vmem:[%s8] sm:$0x1]
    %v554 = vlaneseq
    %v555 = vshrl.u32 %v554, 7
    %v556 = vsub.s32 0, %v555
    %v557 = vrot.slane %v552, %v556
    %v591 = vunpack.c.l.b16 %v520
    %v592 = vunpack.c.l.b16 %v521
    %v593 = vunpack.c.l.b16 %v522
    %v594 = vunpack.c.l.b16 %v523
    %v595 = vunpack.c.l.b16 %v524
    %v596 = vunpack.c.l.b16 %v525
    %v597 = vunpack.c.l.b16 %v526
    %v598 = vunpack.c.l.b16 %v527
    %v599 = vunpack.c.l.b16 %v528
    %v600 = vunpack.c.l.b16 %v529
    %v601 = vunpack.c.l.b16 %v530
    %v602 = vunpack.c.l.b16 %v531
    %v603 = vunpack.c.l.b16 %v532
    %v604 = vunpack.c.l.b16 %v533
    %v605 = vunpack.c.l.b16 %v534
    %v606 = vunpack.c.l.b16 %v535
    %v607 = vunpack.c.l.b16 %v536
    %v608 = vunpack.c.l.b16 %v537
    %v609 = vunpack.c.l.b16 %v538
    %v610 = vunpack.c.l.b16 %v539
    %v611 = vunpack.c.l.b16 %v540
    %v612 = vunpack.c.l.b16 %v541
    %v613 = vunpack.c.l.b16 %v542
    %v614 = vunpack.c.l.b16 %v543
    %v615 = vunpack.c.l.b16 %v544
    %v616 = vunpack.c.l.b16 %v545
    %v617 = vunpack.c.l.b16 %v546
    %v618 = vunpack.c.l.b16 %v547
    %v619 = vunpack.c.l.b16 %v548
    %v620 = vunpack.c.l.b16 %v549
    %v621 = vunpack.c.l.b16 %v550
    %v622 = vunpack.c.l.b16 %v551
    %v623 = vpack.c.b16 %v592, %v591
    %v624 = vpack.c.b16 %v594, %v593
    %v625 = vpack.c.b16 %v596, %v595
    %v626 = vpack.c.b16 %v598, %v597
    %v627 = vpack.c.b16 %v600, %v599
    %v628 = vpack.c.b16 %v602, %v601
    %v629 = vpack.c.b16 %v604, %v603
    %v630 = vpack.c.b16 %v606, %v605
    %v631 = vpack.c.b16 %v608, %v607
    %v632 = vpack.c.b16 %v610, %v609
    %v633 = vpack.c.b16 %v612, %v611
    %v634 = vpack.c.b16 %v614, %v613
    %v635 = vpack.c.b16 %v616, %v615
    %v636 = vpack.c.b16 %v618, %v617
    %v637 = vpack.c.b16 %v620, %v619
    %v638 = vpack.c.b16 %v622, %v621
    %655 = vmatprep.subr.bf16.mxu0 0
    %656 = vmatpush1.bf16.msra.mxu0 %v623
    %657 = vmatprep.subr.bf16.mxu0 0
    %658 = vmatpush1.bf16.msra.mxu0 %v624
    %659 = vmatprep.subr.bf16.mxu0 0
    %660 = vmatpush1.bf16.msra.mxu0 %v625
    %661 = vmatprep.subr.bf16.mxu0 0
    %662 = vmatpush1.bf16.msra.mxu0 %v626
    %663 = vmatprep.subr.bf16.mxu0 0
    %664 = vmatpush1.bf16.msra.mxu0 %v627
    %665 = vmatprep.subr.bf16.mxu0 0
    %666 = vmatpush1.bf16.msra.mxu0 %v628
    %667 = vmatprep.subr.bf16.mxu0 0
    %668 = vmatpush1.bf16.msra.mxu0 %v629
    %669 = vmatprep.subr.bf16.mxu0 0
    %670 = vmatpush1.bf16.msra.mxu0 %v630
    %671 = vmatprep.subr.bf16.mxu0 0
    %672 = vmatpush1.bf16.msra.mxu0 %v631
    %673 = vmatprep.subr.bf16.mxu0 0
    %674 = vmatpush1.bf16.msra.mxu0 %v632
    %675 = vmatprep.subr.bf16.mxu0 0
    %676 = vmatpush1.bf16.msra.mxu0 %v633
    %677 = vmatprep.subr.bf16.mxu0 0
    %678 = vmatpush1.bf16.msra.mxu0 %v634
    %679 = vmatprep.subr.bf16.mxu0 0
    %680 = vmatpush1.bf16.msra.mxu0 %v635
    %681 = vmatprep.subr.bf16.mxu0 0
    %682 = vmatpush1.bf16.msra.mxu0 %v636
    %683 = vmatprep.subr.bf16.mxu0 0
    %684 = vmatpush1.bf16.msra.mxu0 %v637
    %685 = vmatprep.subr.bf16.mxu0 0
    %686 = vmatpush1.bf16.msra.mxu0 %v638
    %687 = vmatprep.mubr.bf16.mxu0 %v519
    %688 = vmatmul.mubr.bf16.gmra.mrb[0].mxu0 %v518
    %v689 = vpop.f32.mrb[0].mxu0
    %v690 = vadd.f32 %v557, %v689
    %v691 = vpop.f32.mrb[0].mxu0
    %v692 = vpop.f32.mrb[0].mxu0
    %v693 = vpop.f32.mrb[0].mxu0
    %694 = vdwg.mxu0
    %695 = vst [vmem:[#allocation13] sm:$0xff] %v690
    // Predicated region
    $region62: #{tpu_custom_call.1} parent=1 // pred_check
      _
    $region63: #{tpu_custom_call.1} parent=1 // pred_check_branch
      %697 = sbr.rel (0) target = $region65
    $region64: #{tpu_custom_call.1} parent=1 // pred_region
      %s699 = ssub.s32 128, 128
      %700 = vsyncadd [#allocation4], %s699
      %s702 = sshll.u32 [#allocation13], 4
      %s703 = int_to_ptr.vmem [resolvable:$true] %s702
      %705 = dma.vmem_to_hbm [thread:$0]  %s703, 128, %s9, [#allocation4]
    $region65: #{tpu_custom_call.1} parent=1 // pred_fallthru
      _
    // Predicated region
    $region66: #{tpu_custom_call.1} parent=1 // pred_check
      _
    $region67: #{tpu_custom_call.1} parent=1 // pred_check_branch
      %707 = sbr.rel (0) target = $region69
    $region68: #{tpu_custom_call.1} parent=1 // pred_region
      %708 = dma.done [#allocation4], 128
    $region69: #{tpu_custom_call.1} parent=1 // pred_fallthru
      _
    %709 = vsyncpa [#allocation3], 1
    %710 = vsyncpa [#allocation6], 1
    %711 = vsyncpa [#allocation9], 1
    %712 = vsyncpa [#allocation12], 1
    %713 = vsyncpa [#allocation4], 1

</llo_original>
